<compile_context>
chip_gen: v5e
topology: v5e:2x2
jax: 0.10.0
libtpu: 0.0.40
codegen_flags: <defaults>
</compile_context>

<pallas_src>
import functools

import jax
import jax.numpy as jnp
from jax.experimental import pallas as pl
from jax.experimental.pallas import tpu as pltpu


def _pick_tt(t, n, *, lane_cap=2048, tt_cap=64):
    """Choose how many time slices to batch per grid step.

    Prefers TT == t (contiguous, full-extent blocks).  Otherwise picks the largest
    divisor of t that keeps blocks tile-aligned (TT % 8 == 0, (TT*n) % 128 == 0) and
    bounded in size.
    """
    if t <= tt_cap and t * n <= lane_cap:
        return t
    cands = [d for d in range(1, min(t, tt_cap) + 1)
             if t % d == 0 and d % 8 == 0 and (d * n) % 128 == 0 and d * n <= lane_cap]
    return max(cands) if cands else t


def _slayer_kernel(x_ref, l_ref, w_ref, b_ref, o_ref, xp_ref, p_ref,
                   *, ks, cin, cout, tt, n, residual):
    # ---- graph propagation: all ks graph kernels fused into one MXU matmul -------------
    # x tile: (cin, tt, n); collapse leading dims (tile-aligned) -> (cin*tt, n)
    x2 = x_ref[...].reshape(cin * tt, n).astype(jnp.bfloat16)
    xp = jnp.dot(x2, l_ref[...], preferred_element_type=jnp.float32)     # (cin*tt, ks*n)
    xp_ref[...] = xp.reshape(cin, tt, ks * n)                            # tile-aligned split

    # pre-zero padded residual channels once per step (cin < cout case)
    if residual == "pad":
        p_ref[ks * cin + cin: ks * cin + cout, :] = jnp.zeros(
            (cout - cin, tt * n), jnp.float32)

    # ---- relayout (c, tau | k, j) -> (k*cin + c | tau*n + j) via VMEM scratch -----------
    # p_ref rows [k*cin + c] hold the propagated signal for graph kernel k / channel c,
    # rows [ks*cin + c] hold the raw input (residual / folded 1x1-conv operand);
    # columns are tau*n + j.  Only ref-level (addressing) slices are used here.
    for tau in range(tt):
        cs = slice(tau * n, (tau + 1) * n)
        for k in range(ks):
            p_ref[k * cin:(k + 1) * cin, cs] = xp_ref[:, tau, k * n:(k + 1) * n]
        p_ref[ks * cin: ks * cin + cin, cs] = x_ref[:, tau, :]

    # ---- channel mixing: single (cout, kdim) @ (kdim, tt*n) MXU matmul ------------------
    # For the cin > cout case the 1x1-conv residual weights are folded into w_ref's last
    # cin columns, so the residual matmul rides along in the same MXU op.
    kdim = ks * cin + (cin if residual == "conv" else 0)
    acc = jnp.dot(w_ref[...], p_ref[0:kdim, :].astype(jnp.bfloat16),
                  preferred_element_type=jnp.float32)                    # (cout, tt*n)
    acc = acc + b_ref[...]                                               # folded biases, f32

    # ---- residual + ReLU (f32 epilogue), lane-dense store -------------------------------
    if residual != "conv":           # identity (cin == cout) or zero-pad (cin < cout): exact f32 add
        res_rows = cout if residual == "pad" else cin
        acc = acc + p_ref[ks * cin: ks * cin + res_rows, :]
    o_ref[...] = jnp.maximum(acc, 0.0).astype(o_ref.dtype)


@functools.partial(jax.jit, static_argnames=("ks",))
def slayer_forward(x, Llist, gconv_w, gconv_b, lin_w, lin_b, *, ks):
    """x: (b, cin, t, n) float32.  Returns (b, cout, t, n) float32."""
    b, cin, t, n = x.shape
    cout = gconv_w.shape[0]

    tt = _pick_tt(t, n)                       # time slices per grid step (divides t)
    grid = (b, t // tt)

    # ---- parameter repacking (tiny, wrapper-side) ----
    lcat = Llist.astype(jnp.bfloat16)                                  # (n, ks*n), k-major cols
    w2 = (gconv_w.reshape(cout, cin, ks).transpose(0, 2, 1)
          .reshape(cout, ks * cin).astype(jnp.bfloat16))               # cols ordered k*cin + c

    if cin > cout:
        residual = "conv"
        # fold the 1x1-conv residual weight into the channel-mixing matmul and both biases
        w2 = jnp.concatenate([w2, lin_w.astype(jnp.bfloat16)], axis=1)  # (cout, ks*cin + cin)
        bias = (gconv_b + lin_b).astype(jnp.float32).reshape(cout, 1)
    elif cin < cout:
        residual = "pad"
        bias = gconv_b.astype(jnp.float32).reshape(cout, 1)
    else:
        residual = "add"
        bias = gconv_b.astype(jnp.float32).reshape(cout, 1)
    kdim = w2.shape[1]

    in_specs = [
        # x read in its native NCHW-style layout (no wrapper transpose)
        pl.BlockSpec((None, cin, tt, n), lambda ib, it: (ib, 0, it, 0)),
        # grid-invariant operands: constant index maps -> fetched once, kept resident
        pl.BlockSpec((n, ks * n), lambda ib, it: (0, 0)),
        pl.BlockSpec((cout, kdim), lambda ib, it: (0, 0)),
        pl.BlockSpec((cout, 1), lambda ib, it: (0, 0)),
    ]

    kernel = functools.partial(_slayer_kernel, ks=ks, cin=cin, cout=cout,
                               tt=tt, n=n, residual=residual)

    flops = 2 * b * t * n * (cin * ks * n + cout * kdim)
    bytes_accessed = (4 * (x.size + b * cout * t * n + bias.size)
                      + 2 * (lcat.size + w2.size))

    out = pl.pallas_call(
        kernel,
        out_shape=jax.ShapeDtypeStruct((b, cout, t * n), jnp.float32),
        grid_spec=pltpu.PrefetchScalarGridSpec(
            num_scalar_prefetch=0,
            grid=grid,
            in_specs=in_specs,
            # lane-dense output block: tt*n lanes per store
            out_specs=pl.BlockSpec((None, cout, tt * n), lambda ib, it: (ib, 0, it)),
            scratch_shapes=[
                pltpu.VMEM((cin, tt, ks * n), jnp.float32),                    # propagated signal
                pltpu.VMEM((ks * cin + max(cin, cout), tt * n), jnp.float32),  # matmul-2 operand
            ],
        ),
        compiler_params=pltpu.CompilerParams(
            dimension_semantics=("parallel", "parallel"),
            vmem_limit_bytes=32 * 1024 * 1024),
        cost_estimate=pl.CostEstimate(flops=flops, transcendentals=0,
                                      bytes_accessed=bytes_accessed),
    )(x, lcat, w2, bias)

    # free last-dim split back to the PyTorch NCHW-style layout
    return out.reshape(b, cout, t, n)


def slayer_ref(x, Llist, gconv_w, gconv_b, lin_w, lin_b, *, ks):
    """Pure-JAX transliteration of the torch forward, for verification."""
    b, c, t, n = x.shape
    cin = c
    cout = gconv_w.shape[0]
    if cin > cout:
        xin = jnp.einsum('bcth,oc->both', x, lin_w) + lin_b[None, :, None, None]
    elif cin < cout:
        xin = jnp.concatenate(
            [x, jnp.zeros((b, cout - cin, t, n), x.dtype)], axis=1)
    else:
        xin = x
    xtmp = (x.reshape(-1, n) @ Llist).reshape(b, c, t, ks, n)
    xtmp = jnp.transpose(xtmp, (0, 2, 4, 1, 3)).reshape(-1, c * ks)
    xtmp = (xtmp @ gconv_w.T + gconv_b).reshape(b, t, n, cout)
    xtmp = jnp.transpose(xtmp, (0, 3, 1, 2))
    return jnp.maximum(xtmp + xin, 0.0)


if __name__ == "__main__":
    key = jax.random.PRNGKey(0)
    b, t, n, ks = 2, 8, 16, 3
    ok = True
    # exercise all three residual branches: cin == cout, cin > cout, cin < cout
    for cin, cout in [(4, 4), (6, 4), (3, 6)]:
        key, kx, kl, kw, kb, klw, klb = jax.random.split(key, 7)
        x = jax.random.normal(kx, (b, cin, t, n), jnp.float32)
        Llist = 0.3 * jax.random.normal(kl, (n, ks * n), jnp.float32)
        gconv_w = 0.2 * jax.random.normal(kw, (cout, cin * ks), jnp.float32)
        gconv_b = 0.1 * jax.random.normal(kb, (cout,), jnp.float32)
        lin_w = 0.2 * jax.random.normal(klw, (cout, cin), jnp.float32)   # 1x1 conv weight
        lin_b = 0.1 * jax.random.normal(klb, (cout,), jnp.float32)       # 1x1 conv bias

        out = jax.block_until_ready(
            slayer_forward(x, Llist, gconv_w, gconv_b, lin_w, lin_b, ks=ks))
        ref = slayer_ref(x, Llist, gconv_w, gconv_b, lin_w, lin_b, ks=ks)

        if out.shape != (b, cout, t, n):
            ok = False
        # tolerance sized for bf16 MXU operands (7-bit mantissa) with f32 accumulation;
        # the identity / zero-pad residual paths and epilogue are exact f32.
        if not bool(jnp.allclose(out, ref, atol=3e-2, rtol=3e-2)):
            ok = False

    if ok:
        print("KERNEL_OK")
</pallas_src>

<mosaic_0001>
module attributes {stable_mosaic.version = 11 : i64} {
  func.func @_slayer_kernel(%arg0: i32, %arg1: i32, %arg2: memref<1x4x8x16xf32, #tpu.memory_space<vmem>>, %arg3: memref<16x48xbf16, #tpu.memory_space<vmem>>, %arg4: memref<4x12xbf16, #tpu.memory_space<vmem>>, %arg5: memref<4x1xf32, #tpu.memory_space<vmem>>, %arg6: memref<1x4x128xf32, #tpu.memory_space<vmem>>, %arg7: memref<4x8x48xf32, #tpu.memory_space<vmem>>, %arg8: memref<16x128xf32, #tpu.memory_space<vmem>>) attributes {dimension_semantics = [#tpu.dimension_semantics<parallel>, #tpu.dimension_semantics<parallel>], iteration_bounds = array<i64: 2, 1>, scalar_prefetch = 0 : i64, scratch_operands = 2 : i64, tpu.core_type = #tpu.core_type<tc>, window_params = [{transform_indices = @transform_0, window_bounds = array<i64: 1, 4, 8, 16>}, {pipeline_mode = #tpu.pipeline_mode<synchronous>, transform_indices = @transform_1, window_bounds = array<i64: 16, 48>}, {pipeline_mode = #tpu.pipeline_mode<synchronous>, transform_indices = @transform_2, window_bounds = array<i64: 4, 12>}, {pipeline_mode = #tpu.pipeline_mode<synchronous>, transform_indices = @transform_3, window_bounds = array<i64: 4, 1>}, {transform_indices = @transform_4, window_bounds = array<i64: 1, 4, 128>}]} {
    %c0 = arith.constant 0 : index
    %c0_0 = arith.constant 0 : index
    %c0_1 = arith.constant 0 : index
    %c0_2 = arith.constant 0 : index
    %0 = vector.load %arg2[%c0, %c0_0, %c0_1, %c0_2] : memref<1x4x8x16xf32, #tpu.memory_space<vmem>>, vector<1x4x8x16xf32>
    %1 = vector.shape_cast %0 : vector<1x4x8x16xf32> to vector<4x8x16xf32>
    %2 = vector.shape_cast %1 : vector<4x8x16xf32> to vector<32x16xf32>
    %3 = arith.truncf %2 : vector<32x16xf32> to vector<32x16xbf16>
    %c0_3 = arith.constant 0 : index
    %c0_4 = arith.constant 0 : index
    %4 = vector.load %arg3[%c0_3, %c0_4] : memref<16x48xbf16, #tpu.memory_space<vmem>>, vector<16x48xbf16>
    %cst = arith.constant dense<0.000000e+00> : vector<32x48xf32>
    %5 = tpu.matmul %3, %4, %cst {dimension_numbers = #tpu.dot_dimension_numbers<[1], [0], [0], [1], [0, 0, 1, 1], [], []>} : vector<32x16xbf16>, vector<16x48xbf16>, vector<32x48xf32> -> vector<32x48xf32>
    %6 = vector.shape_cast %5 : vector<32x48xf32> to vector<4x8x48xf32>
    %c0_5 = arith.constant 0 : index
    %c0_6 = arith.constant 0 : index
    %c0_7 = arith.constant 0 : index
    %7 = vector.load %arg7[%c0_5, %c0_6, %c0_7] : memref<4x8x48xf32, #tpu.memory_space<vmem>>, vector<4x8x48xf32>
    tpu.vector_store %arg7[%c0_5, %c0_6, %c0_7], %6 {strides = array<i32>} : memref<4x8x48xf32, #tpu.memory_space<vmem>>, vector<4x8x48xf32>,
    %c0_8 = arith.constant 0 : index
    %c0_9 = arith.constant 0 : index
    %c0_10 = arith.constant 0 : index
    %8 = vector.load %arg7[%c0_8, %c0_9, %c0_10] : memref<4x8x48xf32, #tpu.memory_space<vmem>>, vector<4x1x16xf32>
    %9 = vector.shape_cast %8 : vector<4x1x16xf32> to vector<4x16xf32>
    %c0_11 = arith.constant 0 : index
    %c0_12 = arith.constant 0 : index
    %10 = vector.load %arg8[%c0_11, %c0_12] : memref<16x128xf32, #tpu.memory_space<vmem>>, vector<4x16xf32>
    tpu.vector_store %arg8[%c0_11, %c0_12], %9 {strides = array<i32>} : memref<16x128xf32, #tpu.memory_space<vmem>>, vector<4x16xf32>,
    %c0_13 = arith.constant 0 : index
    %c0_14 = arith.constant 0 : index
    %c16 = arith.constant 16 : index
    %11 = vector.load %arg7[%c0_13, %c0_14, %c16] : memref<4x8x48xf32, #tpu.memory_space<vmem>>, vector<4x1x16xf32>
    %12 = vector.shape_cast %11 : vector<4x1x16xf32> to vector<4x16xf32>
    %c4 = arith.constant 4 : index
    %c0_15 = arith.constant 0 : index
    %13 = vector.load %arg8[%c4, %c0_15] : memref<16x128xf32, #tpu.memory_space<vmem>>, vector<4x16xf32>
    tpu.vector_store %arg8[%c4, %c0_15], %12 {strides = array<i32>} : memref<16x128xf32, #tpu.memory_space<vmem>>, vector<4x16xf32>,
    %c0_16 = arith.constant 0 : index
    %c0_17 = arith.constant 0 : index
    %c32 = arith.constant 32 : index
    %14 = vector.load %arg7[%c0_16, %c0_17, %c32] : memref<4x8x48xf32, #tpu.memory_space<vmem>>, vector<4x1x16xf32>
    %15 = vector.shape_cast %14 : vector<4x1x16xf32> to vector<4x16xf32>
    %c8 = arith.constant 8 : index
    %c0_18 = arith.constant 0 : index
    %16 = vector.load %arg8[%c8, %c0_18] : memref<16x128xf32, #tpu.memory_space<vmem>>, vector<4x16xf32>
    tpu.vector_store %arg8[%c8, %c0_18], %15 {strides = array<i32>} : memref<16x128xf32, #tpu.memory_space<vmem>>, vector<4x16xf32>,
    %c0_19 = arith.constant 0 : index
    %c0_20 = arith.constant 0 : index
    %c0_21 = arith.constant 0 : index
    %c0_22 = arith.constant 0 : index
    %17 = vector.load %arg2[%c0_19, %c0_20, %c0_21, %c0_22] : memref<1x4x8x16xf32, #tpu.memory_space<vmem>>, vector<1x4x1x16xf32>
    %18 = vector.shape_cast %17 : vector<1x4x1x16xf32> to vector<4x16xf32>
    %c12 = arith.constant 12 : index
    %c0_23 = arith.constant 0 : index
    %19 = vector.load %arg8[%c12, %c0_23] : memref<16x128xf32, #tpu.memory_space<vmem>>, vector<4x16xf32>
    tpu.vector_store %arg8[%c12, %c0_23], %18 {strides = array<i32>} : memref<16x128xf32, #tpu.memory_space<vmem>>, vector<4x16xf32>,
    %c0_24 = arith.constant 0 : index
    %c1 = arith.constant 1 : index
    %c0_25 = arith.constant 0 : index
    %20 = vector.load %arg7[%c0_24, %c1, %c0_25] : memref<4x8x48xf32, #tpu.memory_space<vmem>>, vector<4x1x16xf32>
    %21 = vector.shape_cast %20 : vector<4x1x16xf32> to vector<4x16xf32>
    %c0_26 = arith.constant 0 : index
    %c16_27 = arith.constant 16 : index
    %22 = vector.load %arg8[%c0_26, %c16_27] : memref<16x128xf32, #tpu.memory_space<vmem>>, vector<4x16xf32>
    tpu.vector_store %arg8[%c0_26, %c16_27], %21 {strides = array<i32>} : memref<16x128xf32, #tpu.memory_space<vmem>>, vector<4x16xf32>,
    %c0_28 = arith.constant 0 : index
    %c1_29 = arith.constant 1 : index
    %c16_30 = arith.constant 16 : index
    %23 = vector.load %arg7[%c0_28, %c1_29, %c16_30] : memref<4x8x48xf32, #tpu.memory_space<vmem>>, vector<4x1x16xf32>
    %24 = vector.shape_cast %23 : vector<4x1x16xf32> to vector<4x16xf32>
    %c4_31 = arith.constant 4 : index
    %c16_32 = arith.constant 16 : index
    %25 = vector.load %arg8[%c4_31, %c16_32] : memref<16x128xf32, #tpu.memory_space<vmem>>, vector<4x16xf32>
    tpu.vector_store %arg8[%c4_31, %c16_32], %24 {strides = array<i32>} : memref<16x128xf32, #tpu.memory_space<vmem>>, vector<4x16xf32>,
    %c0_33 = arith.constant 0 : index
    %c1_34 = arith.constant 1 : index
    %c32_35 = arith.constant 32 : index
    %26 = vector.load %arg7[%c0_33, %c1_34, %c32_35] : memref<4x8x48xf32, #tpu.memory_space<vmem>>, vector<4x1x16xf32>
    %27 = vector.shape_cast %26 : vector<4x1x16xf32> to vector<4x16xf32>
    %c8_36 = arith.constant 8 : index
    %c16_37 = arith.constant 16 : index
    %28 = vector.load %arg8[%c8_36, %c16_37] : memref<16x128xf32, #tpu.memory_space<vmem>>, vector<4x16xf32>
    tpu.vector_store %arg8[%c8_36, %c16_37], %27 {strides = array<i32>} : memref<16x128xf32, #tpu.memory_space<vmem>>, vector<4x16xf32>,
    %c0_38 = arith.constant 0 : index
    %c0_39 = arith.constant 0 : index
    %c1_40 = arith.constant 1 : index
    %c0_41 = arith.constant 0 : index
    %29 = vector.load %arg2[%c0_38, %c0_39, %c1_40, %c0_41] : memref<1x4x8x16xf32, #tpu.memory_space<vmem>>, vector<1x4x1x16xf32>
    %30 = vector.shape_cast %29 : vector<1x4x1x16xf32> to vector<4x16xf32>
    %c12_42 = arith.constant 12 : index
    %c16_43 = arith.constant 16 : index
    %31 = vector.load %arg8[%c12_42, %c16_43] : memref<16x128xf32, #tpu.memory_space<vmem>>, vector<4x16xf32>
    tpu.vector_store %arg8[%c12_42, %c16_43], %30 {strides = array<i32>} : memref<16x128xf32, #tpu.memory_space<vmem>>, vector<4x16xf32>,
    %c0_44 = arith.constant 0 : index
    %c2 = arith.constant 2 : index
    %c0_45 = arith.constant 0 : index
    %32 = vector.load %arg7[%c0_44, %c2, %c0_45] : memref<4x8x48xf32, #tpu.memory_space<vmem>>, vector<4x1x16xf32>
    %33 = vector.shape_cast %32 : vector<4x1x16xf32> to vector<4x16xf32>
    %c0_46 = arith.constant 0 : index
    %c32_47 = arith.constant 32 : index
    %34 = vector.load %arg8[%c0_46, %c32_47] : memref<16x128xf32, #tpu.memory_space<vmem>>, vector<4x16xf32>
    tpu.vector_store %arg8[%c0_46, %c32_47], %33 {strides = array<i32>} : memref<16x128xf32, #tpu.memory_space<vmem>>, vector<4x16xf32>,
    %c0_48 = arith.constant 0 : index
    %c2_49 = arith.constant 2 : index
    %c16_50 = arith.constant 16 : index
    %35 = vector.load %arg7[%c0_48, %c2_49, %c16_50] : memref<4x8x48xf32, #tpu.memory_space<vmem>>, vector<4x1x16xf32>
    %36 = vector.shape_cast %35 : vector<4x1x16xf32> to vector<4x16xf32>
    %c4_51 = arith.constant 4 : index
    %c32_52 = arith.constant 32 : index
    %37 = vector.load %arg8[%c4_51, %c32_52] : memref<16x128xf32, #tpu.memory_space<vmem>>, vector<4x16xf32>
    tpu.vector_store %arg8[%c4_51, %c32_52], %36 {strides = array<i32>} : memref<16x128xf32, #tpu.memory_space<vmem>>, vector<4x16xf32>,
    %c0_53 = arith.constant 0 : index
    %c2_54 = arith.constant 2 : index
    %c32_55 = arith.constant 32 : index
    %38 = vector.load %arg7[%c0_53, %c2_54, %c32_55] : memref<4x8x48xf32, #tpu.memory_space<vmem>>, vector<4x1x16xf32>
    %39 = vector.shape_cast %38 : vector<4x1x16xf32> to vector<4x16xf32>
    %c8_56 = arith.constant 8 : index
    %c32_57 = arith.constant 32 : index
    %40 = vector.load %arg8[%c8_56, %c32_57] : memref<16x128xf32, #tpu.memory_space<vmem>>, vector<4x16xf32>
    tpu.vector_store %arg8[%c8_56, %c32_57], %39 {strides = array<i32>} : memref<16x128xf32, #tpu.memory_space<vmem>>, vector<4x16xf32>,
    %c0_58 = arith.constant 0 : index
    %c0_59 = arith.constant 0 : index
    %c2_60 = arith.constant 2 : index
    %c0_61 = arith.constant 0 : index
    %41 = vector.load %arg2[%c0_58, %c0_59, %c2_60, %c0_61] : memref<1x4x8x16xf32, #tpu.memory_space<vmem>>, vector<1x4x1x16xf32>
    %42 = vector.shape_cast %41 : vector<1x4x1x16xf32> to vector<4x16xf32>
    %c12_62 = arith.constant 12 : index
    %c32_63 = arith.constant 32 : index
    %43 = vector.load %arg8[%c12_62, %c32_63] : memref<16x128xf32, #tpu.memory_space<vmem>>, vector<4x16xf32>
    tpu.vector_store %arg8[%c12_62, %c32_63], %42 {strides = array<i32>} : memref<16x128xf32, #tpu.memory_space<vmem>>, vector<4x16xf32>,
    %c0_64 = arith.constant 0 : index
    %c3 = arith.constant 3 : index
    %c0_65 = arith.constant 0 : index
    %44 = vector.load %arg7[%c0_64, %c3, %c0_65] : memref<4x8x48xf32, #tpu.memory_space<vmem>>, vector<4x1x16xf32>
    %45 = vector.shape_cast %44 : vector<4x1x16xf32> to vector<4x16xf32>
    %c0_66 = arith.constant 0 : index
    %c48 = arith.constant 48 : index
    %46 = vector.load %arg8[%c0_66, %c48] : memref<16x128xf32, #tpu.memory_space<vmem>>, vector<4x16xf32>
    tpu.vector_store %arg8[%c0_66, %c48], %45 {strides = array<i32>} : memref<16x128xf32, #tpu.memory_space<vmem>>, vector<4x16xf32>,
    %c0_67 = arith.constant 0 : index
    %c3_68 = arith.constant 3 : index
    %c16_69 = arith.constant 16 : index
    %47 = vector.load %arg7[%c0_67, %c3_68, %c16_69] : memref<4x8x48xf32, #tpu.memory_space<vmem>>, vector<4x1x16xf32>
    %48 = vector.shape_cast %47 : vector<4x1x16xf32> to vector<4x16xf32>
    %c4_70 = arith.constant 4 : index
    %c48_71 = arith.constant 48 : index
    %49 = vector.load %arg8[%c4_70, %c48_71] : memref<16x128xf32, #tpu.memory_space<vmem>>, vector<4x16xf32>
    tpu.vector_store %arg8[%c4_70, %c48_71], %48 {strides = array<i32>} : memref<16x128xf32, #tpu.memory_space<vmem>>, vector<4x16xf32>,
    %c0_72 = arith.constant 0 : index
    %c3_73 = arith.constant 3 : index
    %c32_74 = arith.constant 32 : index
    %50 = vector.load %arg7[%c0_72, %c3_73, %c32_74] : memref<4x8x48xf32, #tpu.memory_space<vmem>>, vector<4x1x16xf32>
    %51 = vector.shape_cast %50 : vector<4x1x16xf32> to vector<4x16xf32>
    %c8_75 = arith.constant 8 : index
    %c48_76 = arith.constant 48 : index
    %52 = vector.load %arg8[%c8_75, %c48_76] : memref<16x128xf32, #tpu.memory_space<vmem>>, vector<4x16xf32>
    tpu.vector_store %arg8[%c8_75, %c48_76], %51 {strides = array<i32>} : memref<16x128xf32, #tpu.memory_space<vmem>>, vector<4x16xf32>,
    %c0_77 = arith.constant 0 : index
    %c0_78 = arith.constant 0 : index
    %c3_79 = arith.constant 3 : index
    %c0_80 = arith.constant 0 : index
    %53 = vector.load %arg2[%c0_77, %c0_78, %c3_79, %c0_80] : memref<1x4x8x16xf32, #tpu.memory_space<vmem>>, vector<1x4x1x16xf32>
    %54 = vector.shape_cast %53 : vector<1x4x1x16xf32> to vector<4x16xf32>
    %c12_81 = arith.constant 12 : index
    %c48_82 = arith.constant 48 : index
    %55 = vector.load %arg8[%c12_81, %c48_82] : memref<16x128xf32, #tpu.memory_space<vmem>>, vector<4x16xf32>
    tpu.vector_store %arg8[%c12_81, %c48_82], %54 {strides = array<i32>} : memref<16x128xf32, #tpu.memory_space<vmem>>, vector<4x16xf32>,
    %c0_83 = arith.constant 0 : index
    %c4_84 = arith.constant 4 : index
    %c0_85 = arith.constant 0 : index
    %56 = vector.load %arg7[%c0_83, %c4_84, %c0_85] : memref<4x8x48xf32, #tpu.memory_space<vmem>>, vector<4x1x16xf32>
    %57 = vector.shape_cast %56 : vector<4x1x16xf32> to vector<4x16xf32>
    %c0_86 = arith.constant 0 : index
    %c64 = arith.constant 64 : index
    %58 = vector.load %arg8[%c0_86, %c64] : memref<16x128xf32, #tpu.memory_space<vmem>>, vector<4x16xf32>
    tpu.vector_store %arg8[%c0_86, %c64], %57 {strides = array<i32>} : memref<16x128xf32, #tpu.memory_space<vmem>>, vector<4x16xf32>,
    %c0_87 = arith.constant 0 : index
    %c4_88 = arith.constant 4 : index
    %c16_89 = arith.constant 16 : index
    %59 = vector.load %arg7[%c0_87, %c4_88, %c16_89] : memref<4x8x48xf32, #tpu.memory_space<vmem>>, vector<4x1x16xf32>
    %60 = vector.shape_cast %59 : vector<4x1x16xf32> to vector<4x16xf32>
    %c4_90 = arith.constant 4 : index
    %c64_91 = arith.constant 64 : index
    %61 = vector.load %arg8[%c4_90, %c64_91] : memref<16x128xf32, #tpu.memory_space<vmem>>, vector<4x16xf32>
    tpu.vector_store %arg8[%c4_90, %c64_91], %60 {strides = array<i32>} : memref<16x128xf32, #tpu.memory_space<vmem>>, vector<4x16xf32>,
    %c0_92 = arith.constant 0 : index
    %c4_93 = arith.constant 4 : index
    %c32_94 = arith.constant 32 : index
    %62 = vector.load %arg7[%c0_92, %c4_93, %c32_94] : memref<4x8x48xf32, #tpu.memory_space<vmem>>, vector<4x1x16xf32>
    %63 = vector.shape_cast %62 : vector<4x1x16xf32> to vector<4x16xf32>
    %c8_95 = arith.constant 8 : index
    %c64_96 = arith.constant 64 : index
    %64 = vector.load %arg8[%c8_95, %c64_96] : memref<16x128xf32, #tpu.memory_space<vmem>>, vector<4x16xf32>
    tpu.vector_store %arg8[%c8_95, %c64_96], %63 {strides = array<i32>} : memref<16x128xf32, #tpu.memory_space<vmem>>, vector<4x16xf32>,
    %c0_97 = arith.constant 0 : index
    %c0_98 = arith.constant 0 : index
    %c4_99 = arith.constant 4 : index
    %c0_100 = arith.constant 0 : index
    %65 = vector.load %arg2[%c0_97, %c0_98, %c4_99, %c0_100] : memref<1x4x8x16xf32, #tpu.memory_space<vmem>>, vector<1x4x1x16xf32>
    %66 = vector.shape_cast %65 : vector<1x4x1x16xf32> to vector<4x16xf32>
    %c12_101 = arith.constant 12 : index
    %c64_102 = arith.constant 64 : index
    %67 = vector.load %arg8[%c12_101, %c64_102] : memref<16x128xf32, #tpu.memory_space<vmem>>, vector<4x16xf32>
    tpu.vector_store %arg8[%c12_101, %c64_102], %66 {strides = array<i32>} : memref<16x128xf32, #tpu.memory_space<vmem>>, vector<4x16xf32>,
    %c0_103 = arith.constant 0 : index
    %c5 = arith.constant 5 : index
    %c0_104 = arith.constant 0 : index
    %68 = vector.load %arg7[%c0_103, %c5, %c0_104] : memref<4x8x48xf32, #tpu.memory_space<vmem>>, vector<4x1x16xf32>
    %69 = vector.shape_cast %68 : vector<4x1x16xf32> to vector<4x16xf32>
    %c0_105 = arith.constant 0 : index
    %c80 = arith.constant 80 : index
    %70 = vector.load %arg8[%c0_105, %c80] : memref<16x128xf32, #tpu.memory_space<vmem>>, vector<4x16xf32>
    tpu.vector_store %arg8[%c0_105, %c80], %69 {strides = array<i32>} : memref<16x128xf32, #tpu.memory_space<vmem>>, vector<4x16xf32>,
    %c0_106 = arith.constant 0 : index
    %c5_107 = arith.constant 5 : index
    %c16_108 = arith.constant 16 : index
    %71 = vector.load %arg7[%c0_106, %c5_107, %c16_108] : memref<4x8x48xf32, #tpu.memory_space<vmem>>, vector<4x1x16xf32>
    %72 = vector.shape_cast %71 : vector<4x1x16xf32> to vector<4x16xf32>
    %c4_109 = arith.constant 4 : index
    %c80_110 = arith.constant 80 : index
    %73 = vector.load %arg8[%c4_109, %c80_110] : memref<16x128xf32, #tpu.memory_space<vmem>>, vector<4x16xf32>
    tpu.vector_store %arg8[%c4_109, %c80_110], %72 {strides = array<i32>} : memref<16x128xf32, #tpu.memory_space<vmem>>, vector<4x16xf32>,
    %c0_111 = arith.constant 0 : index
    %c5_112 = arith.constant 5 : index
    %c32_113 = arith.constant 32 : index
    %74 = vector.load %arg7[%c0_111, %c5_112, %c32_113] : memref<4x8x48xf32, #tpu.memory_space<vmem>>, vector<4x1x16xf32>
    %75 = vector.shape_cast %74 : vector<4x1x16xf32> to vector<4x16xf32>
    %c8_114 = arith.constant 8 : index
    %c80_115 = arith.constant 80 : index
    %76 = vector.load %arg8[%c8_114, %c80_115] : memref<16x128xf32, #tpu.memory_space<vmem>>, vector<4x16xf32>
    tpu.vector_store %arg8[%c8_114, %c80_115], %75 {strides = array<i32>} : memref<16x128xf32, #tpu.memory_space<vmem>>, vector<4x16xf32>,
    %c0_116 = arith.constant 0 : index
    %c0_117 = arith.constant 0 : index
    %c5_118 = arith.constant 5 : index
    %c0_119 = arith.constant 0 : index
    %77 = vector.load %arg2[%c0_116, %c0_117, %c5_118, %c0_119] : memref<1x4x8x16xf32, #tpu.memory_space<vmem>>, vector<1x4x1x16xf32>
    %78 = vector.shape_cast %77 : vector<1x4x1x16xf32> to vector<4x16xf32>
    %c12_120 = arith.constant 12 : index
    %c80_121 = arith.constant 80 : index
    %79 = vector.load %arg8[%c12_120, %c80_121] : memref<16x128xf32, #tpu.memory_space<vmem>>, vector<4x16xf32>
    tpu.vector_store %arg8[%c12_120, %c80_121], %78 {strides = array<i32>} : memref<16x128xf32, #tpu.memory_space<vmem>>, vector<4x16xf32>,
    %c0_122 = arith.constant 0 : index
    %c6 = arith.constant 6 : index
    %c0_123 = arith.constant 0 : index
    %80 = vector.load %arg7[%c0_122, %c6, %c0_123] : memref<4x8x48xf32, #tpu.memory_space<vmem>>, vector<4x1x16xf32>
    %81 = vector.shape_cast %80 : vector<4x1x16xf32> to vector<4x16xf32>
    %c0_124 = arith.constant 0 : index
    %c96 = arith.constant 96 : index
    %82 = vector.load %arg8[%c0_124, %c96] : memref<16x128xf32, #tpu.memory_space<vmem>>, vector<4x16xf32>
    tpu.vector_store %arg8[%c0_124, %c96], %81 {strides = array<i32>} : memref<16x128xf32, #tpu.memory_space<vmem>>, vector<4x16xf32>,
    %c0_125 = arith.constant 0 : index
    %c6_126 = arith.constant 6 : index
    %c16_127 = arith.constant 16 : index
    %83 = vector.load %arg7[%c0_125, %c6_126, %c16_127] : memref<4x8x48xf32, #tpu.memory_space<vmem>>, vector<4x1x16xf32>
    %84 = vector.shape_cast %83 : vector<4x1x16xf32> to vector<4x16xf32>
    %c4_128 = arith.constant 4 : index
    %c96_129 = arith.constant 96 : index
    %85 = vector.load %arg8[%c4_128, %c96_129] : memref<16x128xf32, #tpu.memory_space<vmem>>, vector<4x16xf32>
    tpu.vector_store %arg8[%c4_128, %c96_129], %84 {strides = array<i32>} : memref<16x128xf32, #tpu.memory_space<vmem>>, vector<4x16xf32>,
    %c0_130 = arith.constant 0 : index
    %c6_131 = arith.constant 6 : index
    %c32_132 = arith.constant 32 : index
    %86 = vector.load %arg7[%c0_130, %c6_131, %c32_132] : memref<4x8x48xf32, #tpu.memory_space<vmem>>, vector<4x1x16xf32>
    %87 = vector.shape_cast %86 : vector<4x1x16xf32> to vector<4x16xf32>
    %c8_133 = arith.constant 8 : index
    %c96_134 = arith.constant 96 : index
    %88 = vector.load %arg8[%c8_133, %c96_134] : memref<16x128xf32, #tpu.memory_space<vmem>>, vector<4x16xf32>
    tpu.vector_store %arg8[%c8_133, %c96_134], %87 {strides = array<i32>} : memref<16x128xf32, #tpu.memory_space<vmem>>, vector<4x16xf32>,
    %c0_135 = arith.constant 0 : index
    %c0_136 = arith.constant 0 : index
    %c6_137 = arith.constant 6 : index
    %c0_138 = arith.constant 0 : index
    %89 = vector.load %arg2[%c0_135, %c0_136, %c6_137, %c0_138] : memref<1x4x8x16xf32, #tpu.memory_space<vmem>>, vector<1x4x1x16xf32>
    %90 = vector.shape_cast %89 : vector<1x4x1x16xf32> to vector<4x16xf32>
    %c12_139 = arith.constant 12 : index
    %c96_140 = arith.constant 96 : index
    %91 = vector.load %arg8[%c12_139, %c96_140] : memref<16x128xf32, #tpu.memory_space<vmem>>, vector<4x16xf32>
    tpu.vector_store %arg8[%c12_139, %c96_140], %90 {strides = array<i32>} : memref<16x128xf32, #tpu.memory_space<vmem>>, vector<4x16xf32>,
    %c0_141 = arith.constant 0 : index
    %c7 = arith.constant 7 : index
    %c0_142 = arith.constant 0 : index
    %92 = vector.load %arg7[%c0_141, %c7, %c0_142] : memref<4x8x48xf32, #tpu.memory_space<vmem>>, vector<4x1x16xf32>
    %93 = vector.shape_cast %92 : vector<4x1x16xf32> to vector<4x16xf32>
    %c0_143 = arith.constant 0 : index
    %c112 = arith.constant 112 : index
    %94 = vector.load %arg8[%c0_143, %c112] : memref<16x128xf32, #tpu.memory_space<vmem>>, vector<4x16xf32>
    tpu.vector_store %arg8[%c0_143, %c112], %93 {strides = array<i32>} : memref<16x128xf32, #tpu.memory_space<vmem>>, vector<4x16xf32>,
    %c0_144 = arith.constant 0 : index
    %c7_145 = arith.constant 7 : index
    %c16_146 = arith.constant 16 : index
    %95 = vector.load %arg7[%c0_144, %c7_145, %c16_146] : memref<4x8x48xf32, #tpu.memory_space<vmem>>, vector<4x1x16xf32>
    %96 = vector.shape_cast %95 : vector<4x1x16xf32> to vector<4x16xf32>
    %c4_147 = arith.constant 4 : index
    %c112_148 = arith.constant 112 : index
    %97 = vector.load %arg8[%c4_147, %c112_148] : memref<16x128xf32, #tpu.memory_space<vmem>>, vector<4x16xf32>
    tpu.vector_store %arg8[%c4_147, %c112_148], %96 {strides = array<i32>} : memref<16x128xf32, #tpu.memory_space<vmem>>, vector<4x16xf32>,
    %c0_149 = arith.constant 0 : index
    %c7_150 = arith.constant 7 : index
    %c32_151 = arith.constant 32 : index
    %98 = vector.load %arg7[%c0_149, %c7_150, %c32_151] : memref<4x8x48xf32, #tpu.memory_space<vmem>>, vector<4x1x16xf32>
    %99 = vector.shape_cast %98 : vector<4x1x16xf32> to vector<4x16xf32>
    %c8_152 = arith.constant 8 : index
    %c112_153 = arith.constant 112 : index
    %100 = vector.load %arg8[%c8_152, %c112_153] : memref<16x128xf32, #tpu.memory_space<vmem>>, vector<4x16xf32>
    tpu.vector_store %arg8[%c8_152, %c112_153], %99 {strides = array<i32>} : memref<16x128xf32, #tpu.memory_space<vmem>>, vector<4x16xf32>,
    %c0_154 = arith.constant 0 : index
    %c0_155 = arith.constant 0 : index
    %c7_156 = arith.constant 7 : index
    %c0_157 = arith.constant 0 : index
    %101 = vector.load %arg2[%c0_154, %c0_155, %c7_156, %c0_157] : memref<1x4x8x16xf32, #tpu.memory_space<vmem>>, vector<1x4x1x16xf32>
    %102 = vector.shape_cast %101 : vector<1x4x1x16xf32> to vector<4x16xf32>
    %c12_158 = arith.constant 12 : index
    %c112_159 = arith.constant 112 : index
    %103 = vector.load %arg8[%c12_158, %c112_159] : memref<16x128xf32, #tpu.memory_space<vmem>>, vector<4x16xf32>
    tpu.vector_store %arg8[%c12_158, %c112_159], %102 {strides = array<i32>} : memref<16x128xf32, #tpu.memory_space<vmem>>, vector<4x16xf32>,
    %c0_160 = arith.constant 0 : index
    %c0_161 = arith.constant 0 : index
    %104 = vector.load %arg4[%c0_160, %c0_161] : memref<4x12xbf16, #tpu.memory_space<vmem>>, vector<4x12xbf16>
    %c0_162 = arith.constant 0 : index
    %c0_163 = arith.constant 0 : index
    %105 = vector.load %arg8[%c0_162, %c0_163] : memref<16x128xf32, #tpu.memory_space<vmem>>, vector<12x128xf32>
    %106 = arith.truncf %105 : vector<12x128xf32> to vector<12x128xbf16>
    %cst_164 = arith.constant dense<0.000000e+00> : vector<4x128xf32>
    %107 = tpu.matmul %104, %106, %cst_164 {dimension_numbers = #tpu.dot_dimension_numbers<[1], [0], [0], [1], [0, 0, 1, 1], [], []>} : vector<4x12xbf16>, vector<12x128xbf16>, vector<4x128xf32> -> vector<4x128xf32>
    %c0_165 = arith.constant 0 : index
    %c0_166 = arith.constant 0 : index
    %108 = vector.load %arg5[%c0_165, %c0_166] : memref<4x1xf32, #tpu.memory_space<vmem>>, vector<4x1xf32>
    %109 = vector.broadcast %108 : vector<4x1xf32> to vector<4x128xf32>
    %110 = arith.addf %107, %109 : vector<4x128xf32>
    %c12_167 = arith.constant 12 : index
    %c0_168 = arith.constant 0 : index
    %111 = vector.load %arg8[%c12_167, %c0_168] : memref<16x128xf32, #tpu.memory_space<vmem>>, vector<4x128xf32>
    %112 = arith.addf %110, %111 : vector<4x128xf32>
    %cst_169 = arith.constant 0.000000e+00 : f32
    %113 = vector.broadcast %cst_169 : f32 to vector<4x128xf32>
    %114 = arith.maximumf %112, %113 : vector<4x128xf32>
    %c0_170 = arith.constant 0 : index
    %c0_171 = arith.constant 0 : index
    %c0_172 = arith.constant 0 : index
    %115 = vector.load %arg6[%c0_170, %c0_171, %c0_172] : memref<1x4x128xf32, #tpu.memory_space<vmem>>, vector<1x4x128xf32>
    %116 = vector.shape_cast %115 : vector<1x4x128xf32> to vector<4x128xf32>
    %117 = vector.shape_cast %114 : vector<4x128xf32> to vector<1x4x128xf32>
    tpu.vector_store %arg6[%c0_170, %c0_171, %c0_172], %117 {strides = array<i32>} : memref<1x4x128xf32, #tpu.memory_space<vmem>>, vector<1x4x128xf32>,
    return
  }
  func.func @transform_0(%arg0: i32, %arg1: i32) -> (i32, i32, i32, i32) {
    %c0_i32 = arith.constant 0 : i32
    %c0_i32_0 = arith.constant 0 : i32
    %c0_i32_1 = arith.constant 0 : i32
    return %arg0, %c0_i32, %arg1, %c0_i32_0 : i32, i32, i32, i32
  }
  func.func @transform_1(%arg0: i32, %arg1: i32) -> (i32, i32) {
    %c0_i32 = arith.constant 0 : i32
    %c0_i32_0 = arith.constant 0 : i32
    %c0_i32_1 = arith.constant 0 : i32
    return %c0_i32, %c0_i32_0 : i32, i32
  }
  func.func @transform_2(%arg0: i32, %arg1: i32) -> (i32, i32) {
    %c0_i32 = arith.constant 0 : i32
    %c0_i32_0 = arith.constant 0 : i32
    %c0_i32_1 = arith.constant 0 : i32
    return %c0_i32, %c0_i32_0 : i32, i32
  }
  func.func @transform_3(%arg0: i32, %arg1: i32) -> (i32, i32) {
    %c0_i32 = arith.constant 0 : i32
    %c0_i32_0 = arith.constant 0 : i32
    %c0_i32_1 = arith.constant 0 : i32
    return %c0_i32, %c0_i32_0 : i32, i32
  }
  func.func @transform_4(%arg0: i32, %arg1: i32) -> (i32, i32, i32) {
    %c0_i32 = arith.constant 0 : i32
    %c0_i32_0 = arith.constant 0 : i32
    return %arg0, %c0_i32, %arg1 : i32, i32, i32
  }
}

</mosaic_0001>

<llo_original>
// kernel: slayer_forward.1
$region0: #{slayer_forward.1}
  #allocation0 [shape = 'u32[]', space=smem, size = 0x4, offset = 0x4, fixed_abs, tag = 'smem constant byte address 0x4 - core index']
  #allocation1 [shape = 'u32[72,128]{1,0:T(1,128)}', space=vmem, size = 0x9000, scoped, tag = 'internal scratch']
  #allocation2 [shape = 'f32[4,8,48]{2,1,0:T(8,128)}', space=vmem, size = 0x4000, scoped, tag = 'scratch operand']
  #allocation3 [shape = 'f32[16,128]{1,0:T(8,128)}', space=vmem, size = 0x2000, scoped, tag = 'scratch operand']
  %s0 = inlined_call_operand.vmem [shape: f32[2,4,8,16], index: 0, kind: input, shape index: {}]
  %s1 = inlined_call_operand.vmem [shape: bf16[16,48], index: 1, kind: input, shape index: {}]
  %s2 = inlined_call_operand.vmem [shape: bf16[4,12], index: 2, kind: input, shape index: {}]
  %s3 = inlined_call_operand.vmem [shape: f32[4,1], index: 3, kind: input, shape index: {}]
  %s4 = inlined_call_operand.vmem [shape: f32[2,4,128], index: 4, kind: output, shape index: {}]
  %s5 = sld [smem:[#allocation0]]
  $region49: #{slayer_forward.1} parent=0
    _
  %s7 = ssub.s32 1, %s5
  %s8 = scalar_select 0, %s7, %s5
  loop: start=0, step=1, limit=4
  $region2: #{slayer_forward.1} parent=0 // loop_pre_header
    _
  $region3: #{slayer_forward.1} parent=0 // loop_header
    %s10 = sphi 0, %s14
    %p11 = scmp.ge.s32.totalorder %s10, 4
    %s17 = sphi 0, %s29
    %s18 = sphi 0, %s25
    %s19 = sphi 0, %s17
    %s20 = sphi 0, %s18
    %s21 = sphi 0, %s19
    %s22 = sphi 0, %s20
    %s34 = sphi 0, %s36
    %s37 = sphi 0, %s34
    %s38 = sphi 0, %s37
    %s54 = sphi 0, %s38
    %s58 = sphi 0, %s58
    %s60 = sphi 0, %s58
    %s61 = sphi 0, %s60
    %s75 = sphi 0, %s61
    %s79 = sphi 0, %s79
    %s81 = sphi 0, %s79
    %s82 = sphi 0, %s81
    %s96 = sphi 0, %s82
    %s100 = sphi 0, %s100
    %s102 = sphi 0, %s100
    %s103 = sphi 0, %s102
    %s117 = sphi 0, %s103
    %s125 = sphi 0, %s127
    %s128 = sphi 0, %s125
    %s129 = sphi 0, %s128
    %s145 = sphi 0, %s129
  $region4: #{slayer_forward.1} parent=0 // loop_header_branch
    %13 = sbr.rel (%p11) target = $region8
  $region5: #{slayer_forward.1} parent=0 // loop_body
    %s15 = ssub.s32 %s10, 1
    %s16 = ssub.s32 %s10, 2
    %s23 = sadd.s32 1, %s18
    %p24 = scmp.ge.s32.totalorder %s23, 1
    %s25 = scalar_select %p24, 0, %s23
    %s26 = sadd.s32 1, %s17
    %s27 = scalar_select %p24, %s26, %s17
    %p28 = scmp.ge.s32.totalorder %s27, 2
    %s29 = scalar_select %p28, 0, %s27
    %s30 = ssub.s32 %s17, %s29
    %s31 = ssub.s32 %s18, %s25
    %s32 = sor.u32 %s30, %s31
    %p33 = scmp.eq.s32.totalorder %s32, 0
    %s35 = sadd.s32 %s34, 1
    %s36 = scalar_select %p33, %s34, %s35
    %p39 = pneg %p33
    %p40 = scmp.eq.s32.totalorder %s10, 1
    %p41 = por %p39, %p40
    %p42 = scmp.ne.s32.totalorder %s34, %s37
    %p43 = scmp.eq.s32.totalorder %s10, 0
    %p44 = por %p42, %p43
    %p45 = scmp.ne.s32.totalorder %s34, %s37
    %p46 = scmp.eq.s32.totalorder %s15, 1
    %p47 = por %p45, %p46
    %p48 = scmp.ne.s32.totalorder %s37, %s38
    %p49 = scmp.eq.s32.totalorder %s15, 0
    %p50 = por %p48, %p49
    %p51 = scmp.ne.s32.totalorder %s37, %s38
    %p52 = scmp.eq.s32.totalorder %s16, 1
    %p53 = por %p51, %p52
    %p55 = scmp.ne.s32.totalorder %s38, %s54
    %p56 = scmp.eq.s32.totalorder %s16, 0
    %p57 = por %p55, %p56
    %s59 = sadd.s32 %s58, 1
    %p62 = scmp.eq.s32.totalorder %s10, 1
    %p63 = scmp.ne.s32.totalorder %s58, %s60
    %p64 = scmp.eq.s32.totalorder %s10, 0
    %p65 = por %p63, %p64
    %p66 = scmp.ne.s32.totalorder %s58, %s60
    %p67 = scmp.eq.s32.totalorder %s15, 1
    %p68 = por %p66, %p67
    %p69 = scmp.ne.s32.totalorder %s60, %s61
    %p70 = scmp.eq.s32.totalorder %s15, 0
    %p71 = por %p69, %p70
    %p72 = scmp.ne.s32.totalorder %s60, %s61
    %p73 = scmp.eq.s32.totalorder %s16, 1
    %p74 = por %p72, %p73
    %p76 = scmp.ne.s32.totalorder %s61, %s75
    %p77 = scmp.eq.s32.totalorder %s16, 0
    %p78 = por %p76, %p77
    %s80 = sadd.s32 %s79, 1
    %p83 = scmp.eq.s32.totalorder %s10, 1
    %p84 = scmp.ne.s32.totalorder %s79, %s81
    %p85 = scmp.eq.s32.totalorder %s10, 0
    %p86 = por %p84, %p85
    %p87 = scmp.ne.s32.totalorder %s79, %s81
    %p88 = scmp.eq.s32.totalorder %s15, 1
    %p89 = por %p87, %p88
    %p90 = scmp.ne.s32.totalorder %s81, %s82
    %p91 = scmp.eq.s32.totalorder %s15, 0
    %p92 = por %p90, %p91
    %p93 = scmp.ne.s32.totalorder %s81, %s82
    %p94 = scmp.eq.s32.totalorder %s16, 1
    %p95 = por %p93, %p94
    %p97 = scmp.ne.s32.totalorder %s82, %s96
    %p98 = scmp.eq.s32.totalorder %s16, 0
    %p99 = por %p97, %p98
    %s101 = sadd.s32 %s100, 1
    %p104 = scmp.eq.s32.totalorder %s10, 1
    %p105 = scmp.ne.s32.totalorder %s100, %s102
    %p106 = scmp.eq.s32.totalorder %s10, 0
    %p107 = por %p105, %p106
    %p108 = scmp.ne.s32.totalorder %s100, %s102
    %p109 = scmp.eq.s32.totalorder %s15, 1
    %p110 = por %p108, %p109
    %p111 = scmp.ne.s32.totalorder %s102, %s103
    %p112 = scmp.eq.s32.totalorder %s15, 0
    %p113 = por %p111, %p112
    %p114 = scmp.ne.s32.totalorder %s102, %s103
    %p115 = scmp.eq.s32.totalorder %s16, 1
    %p116 = por %p114, %p115
    %p118 = scmp.ne.s32.totalorder %s103, %s117
    %p119 = scmp.eq.s32.totalorder %s16, 0
    %p120 = por %p118, %p119
    %s121 = ssub.s32 %s17, %s29
    %s122 = ssub.s32 %s18, %s25
    %s123 = sor.u32 %s121, %s122
    %p124 = scmp.eq.s32.totalorder %s123, 0
    %s126 = sadd.s32 %s125, 1
    %s127 = scalar_select %p124, %s125, %s126
    %p130 = pneg %p124
    %p131 = scmp.eq.s32.totalorder %s10, 1
    %p132 = por %p130, %p131
    %p133 = scmp.ne.s32.totalorder %s125, %s128
    %p134 = scmp.eq.s32.totalorder %s10, 0
    %p135 = por %p133, %p134
    %p136 = scmp.ne.s32.totalorder %s125, %s128
    %p137 = scmp.eq.s32.totalorder %s15, 1
    %p138 = por %p136, %p137
    %p139 = scmp.ne.s32.totalorder %s128, %s129
    %p140 = scmp.eq.s32.totalorder %s15, 0
    %p141 = por %p139, %p140
    %p142 = scmp.ne.s32.totalorder %s128, %s129
    %p143 = scmp.eq.s32.totalorder %s16, 1
    %p144 = por %p142, %p143
    %p146 = scmp.ne.s32.totalorder %s129, %s145
    %p147 = scmp.eq.s32.totalorder %s16, 0
    %p148 = por %p146, %p147
    %p149 = scmp.le.s32.totalorder 1, %s10
    %p150 = scmp.lt.s32.totalorder %s10, 3
    %p151 = pnand %p149, %p150
    %p152 = pneg %p151
    // Predicated region
    $region9: #{slayer_forward.1} parent=5 // pred_check
      _
    $region10: #{slayer_forward.1} parent=5 // pred_check_branch
      %154 = sbr.rel (%p151) target = $region12
    $region11: #{slayer_forward.1} parent=5 // pred_region
      %s155 = ssub.s32 %s10, 1
      // Predicated region
      $region13: #{slayer_forward.1} parent=11 // pred_check
        %p156 = pneg %p71
      $region14: #{slayer_forward.1} parent=11 // pred_check_branch
        %158 = sbr.rel (%p156) target = $region16
      $region15: #{slayer_forward.1} parent=11 // pred_region
        _
      $region16: #{slayer_forward.1} parent=11 // pred_fallthru
        _
      // Predicated region
      $region17: #{slayer_forward.1} parent=11 // pred_check
        %p159 = pneg %p92
      $region18: #{slayer_forward.1} parent=11 // pred_check_branch
        %161 = sbr.rel (%p159) target = $region20
      $region19: #{slayer_forward.1} parent=11 // pred_region
        _
      $region20: #{slayer_forward.1} parent=11 // pred_fallthru
        _
      // Predicated region
      $region21: #{slayer_forward.1} parent=11 // pred_check
        %p162 = pneg %p113
      $region22: #{slayer_forward.1} parent=11 // pred_check_branch
        %164 = sbr.rel (%p162) target = $region24
      $region23: #{slayer_forward.1} parent=11 // pred_region
        _
      $region24: #{slayer_forward.1} parent=11 // pred_fallthru
        _
    $region12: #{slayer_forward.1} parent=5 // pred_fallthru
      _
    %p165 = scmp.lt.s32.totalorder %s10, 2
    // Predicated region
    $region25: #{slayer_forward.1} parent=5 // pred_check
      %p166 = pneg %p165
    $region26: #{slayer_forward.1} parent=5 // pred_check_branch
      %168 = sbr.rel (%p166) target = $region28
    $region27: #{slayer_forward.1} parent=5 // pred_region
      // Predicated region
      $region29: #{slayer_forward.1} parent=27 // pred_check
        %p169 = pneg %p44
      $region30: #{slayer_forward.1} parent=27 // pred_check_branch
        %171 = sbr.rel (%p169) target = $region32
      $region31: #{slayer_forward.1} parent=27 // pred_region
        %p172 = scmp.lt.s32.totalorder %s17, 1
        %s173 = scalar_select %p172, %s17, 1
        %p174 = scmp.lt.s32.totalorder %s18, 0
        %s175 = scalar_select %p174, %s18, 0
        %s176 = smul.addr %s173, 4
        %s177 = sadd.s32 %s175, %s176
        %s178 = smul.addr %s177, 8
        %s179 = scalar_lea.vmem %s0, %s178
      $region32: #{slayer_forward.1} parent=27 // pred_fallthru
        _
    $region28: #{slayer_forward.1} parent=5 // pred_fallthru
      _
    %p180 = scmp.le.s32.totalorder 1, %s10
    %p181 = scmp.lt.s32.totalorder %s10, 3
    %p182 = pnand %p180, %p181
    %p183 = pneg %p182
    // Predicated region
    $region33: #{slayer_forward.1} parent=5 // pred_check
      _
    $region34: #{slayer_forward.1} parent=5 // pred_check_branch
      %185 = sbr.rel (%p182) target = $region36
    $region35: #{slayer_forward.1} parent=5 // pred_region
      %s186 = ssub.s32 %s10, 1
      %p187 = scmp.lt.s32.totalorder %s19, 1
      %s188 = scalar_select %p187, %s19, 1
      %p189 = scmp.lt.s32.totalorder %s20, 0
      %s190 = scalar_select %p189, %s20, 0
      %s191 = smul.addr %s188, 4
      %s192 = sadd.s32 %s190, %s191
      %s193 = smul.addr %s192, 8
      %s194 = scalar_lea.vmem %s0, %s193
      %p195 = pneg %p50
      %p196 = pneg %p47
      %p197 = pneg %p71
      %p198 = pneg %p68
      %p199 = pneg %p92
      %p200 = pneg %p89
      %p201 = pneg %p113
      %p202 = pneg %p110
      %p203 = pneg %p141
      %p204 = pneg %p138
      %p205 = scmp.lt.s32.totalorder %s19, 1
      %s206 = scalar_select %p205, %s19, 1
      %p207 = scmp.lt.s32.totalorder %s20, 0
      %s208 = scalar_select %p207, %s20, 0
      %s209 = sadd.s32 %s208, %s206
      %s210 = smul.addr %s209, 4
      %s211 = scalar_lea.vmem %s4, %s210
      %p212 = scmp.lt.s32.totalorder %s19, 1
      %s213 = scalar_select %p212, %s19, 1
      %p214 = scmp.lt.s32.totalorder %s20, 0
      %s215 = scalar_select %p214, %s20, 0
      %s216 = smul.addr %s213, 4
      %s217 = sadd.s32 %s215, %s216
      %s218 = smul.addr %s217, 8
      %s219 = scalar_lea.vmem %s0, %s218
      %p220 = scmp.lt.s32.totalorder %s19, 1
      %s221 = scalar_select %p220, %s19, 1
      %p222 = scmp.lt.s32.totalorder %s20, 0
      %s223 = scalar_select %p222, %s20, 0
      %s224 = sadd.s32 %s223, %s221
      %s225 = smul.addr %s224, 4
      %s226 = scalar_lea.vmem %s4, %s225
      %v228 = vld [vmem:[%s219] sm:$0xff]
      %v229 = vld [vmem:[%s219 + $0x8] sm:$0xff]
      %v230 = vld [vmem:[%s219 + $0x10] sm:$0xff]
      %v231 = vld [vmem:[%s219 + $0x18] sm:$0xff]
      %v232 = vpack.c.bf16 %v229, %v228
      %v233 = vpack.c.bf16 %v231, %v230
      %v234 = vld [vmem:[%s1] sm:$0xf]
      %v235 = vld [vmem:[%s1 + $0x4] sm:$0xf]
      %v238 = vunpack.c.l.b16 %v234
      %v239 = vunpack.c.l.b16 %v235
      %v240 = vpack.c.b16 %v239, %v238
      %vm242 = vcmask 130048
      %v244 = vsel %vm242, %v232, 0
      %v247 = vsel %vm242, %v233, 0
      %249 = vmatpush.bf16.msra.mxu0 0
      %250 = vmatpush.bf16.msra.mxu0 0
      %251 = vmatpush.bf16.msra.mxu0 0
      %252 = vmatpush.bf16.msra.mxu0 0
      %253 = vmatpush.bf16.msra.mxu0 0
      %254 = vmatpush.bf16.msra.mxu0 0
      %255 = vmatpush.bf16.msra.mxu0 0
      %256 = vmatpush.bf16.msra.mxu0 %v240
      %257 = vmatmul.bf16.gmra.mxu0 %v244
      %v258 = vpop.f32.mrf.mxu0
      %v259 = vadd.f32 0.0, %v258
      %v260 = vpop.f32.mrf.mxu0
      %v261 = vadd.f32 0.0, %v260
      %262 = vmatmul.bf16.gmra.mxu0 %v247
      %v263 = vpop.f32.mrf.mxu0
      %v264 = vadd.f32 0.0, %v263
      %v265 = vpop.f32.mrf.mxu0
      %v266 = vadd.f32 0.0, %v265
      %267 = vdwg.mxu0
      %vm268 = vcmask 392192
      %269 = vst.msk [vmem:[#allocation2] sm:$0xff] %vm268, %v259
      %270 = vst.msk [vmem:[#allocation2 + $0x8] sm:$0xff] %vm268, %v261
      %271 = vst.msk [vmem:[#allocation2 + $0x10] sm:$0xff] %vm268, %v264
      %272 = vst.msk [vmem:[#allocation2 + $0x18] sm:$0xff] %vm268, %v266
      %v273 = vld [vmem:[#allocation2] sm:$0x1]
      %v274 = vld [vmem:[#allocation2 + $0x8] sm:$0x1]
      %v275 = vld [vmem:[#allocation2 + $0x10] sm:$0x1]
      %v276 = vld [vmem:[#allocation2 + $0x18] sm:$0x1]
      %v281 = vrot.slane %v274, 7
      %vm282 = vcmask 1041409
      %v283 = vsel %vm282, %v281, %v273
      %v284 = vrot.slane %v275, 6
      %vm285 = vcmask 1042434
      %v286 = vsel %vm285, %v284, %v283
      %v287 = vrot.slane %v276, 5
      %vm288 = vcmask 1043459
      %v289 = vsel %vm288, %v287, %v286
      %vm291 = vcmask 125952
      %292 = vst.msk [vmem:[#allocation3] sm:$0xf] %vm291, %v289
      %v293 = vld [vmem:[#allocation2] sm:$0x1]
      %v294 = vld [vmem:[#allocation2 + $0x8] sm:$0x1]
      %v295 = vld [vmem:[#allocation2 + $0x10] sm:$0x1]
      %v296 = vld [vmem:[#allocation2 + $0x18] sm:$0x1]
      %v301 = vrot.slane %v294, 7
      %v302 = vsel %vm282, %v301, %v293
      %v303 = vrot.slane %v295, 6
      %v304 = vsel %vm285, %v303, %v302
      %v305 = vrot.slane %v296, 5
      %v306 = vsel %vm288, %v305, %v304
      %307 = vrot.lane.b32.xlu0 %v306, 112
      %v308 = vpop.permute.xlu0 %307
      %310 = vst.msk [vmem:[#allocation3 + $0x4] sm:$0xf] %vm291, %v308
      %v311 = vld [vmem:[#allocation2] sm:$0x1]
      %v312 = vld [vmem:[#allocation2 + $0x8] sm:$0x1]
      %v313 = vld [vmem:[#allocation2 + $0x10] sm:$0x1]
      %v314 = vld [vmem:[#allocation2 + $0x18] sm:$0x1]
      %v319 = vrot.slane %v312, 7
      %v320 = vsel %vm282, %v319, %v311
      %v321 = vrot.slane %v313, 6
      %v322 = vsel %vm285, %v321, %v320
      %v323 = vrot.slane %v314, 5
      %v324 = vsel %vm288, %v323, %v322
      %325 = vrot.lane.b32.xlu0 %v324, 96
      %v326 = vpop.permute.xlu0 %325
      %328 = vst.msk [vmem:[#allocation3 + $0x8] sm:$0xf] %vm291, %v326
      %v329 = vld [vmem:[%s219] sm:$0x1]
      %v330 = vld [vmem:[%s219 + $0x8] sm:$0x1]
      %v331 = vld [vmem:[%s219 + $0x10] sm:$0x1]
      %v332 = vld [vmem:[%s219 + $0x18] sm:$0x1]
      %v337 = vrot.slane %v330, 7
      %v338 = vsel %vm282, %v337, %v329
      %v339 = vrot.slane %v331, 6
      %v340 = vsel %vm285, %v339, %v338
      %v341 = vrot.slane %v332, 5
      %v342 = vsel %vm288, %v341, %v340
      %344 = vst.msk [vmem:[#allocation3 + $0xc] sm:$0xf] %vm291, %v342
      %v345 = vld [vmem:[#allocation2 + $0x1] sm:$0x1]
      %v346 = vld [vmem:[#allocation2 + $0x9] sm:$0x1]
      %v347 = vld [vmem:[#allocation2 + $0x11] sm:$0x1]
      %v348 = vld [vmem:[#allocation2 + $0x19] sm:$0x1]
      %v353 = vrot.slane %v346, 7
      %v354 = vsel %vm282, %v353, %v345
      %v355 = vrot.slane %v347, 6
      %v356 = vsel %vm285, %v355, %v354
      %v357 = vrot.slane %v348, 5
      %v358 = vsel %vm288, %v357, %v356
      %359 = vrot.lane.b32.xlu0 %v358, 16
      %v360 = vpop.permute.xlu0 %359
      %vm362 = vcmask 257152
      %363 = vst.msk [vmem:[#allocation3] sm:$0xf] %vm362, %v360
      %v364 = vld [vmem:[#allocation2 + $0x1] sm:$0x1]
      %v365 = vld [vmem:[#allocation2 + $0x9] sm:$0x1]
      %v366 = vld [vmem:[#allocation2 + $0x11] sm:$0x1]
      %v367 = vld [vmem:[#allocation2 + $0x19] sm:$0x1]
      %v372 = vrot.slane %v365, 7
      %v373 = vsel %vm282, %v372, %v364
      %v374 = vrot.slane %v366, 6
      %v375 = vsel %vm285, %v374, %v373
      %v376 = vrot.slane %v367, 5
      %v377 = vsel %vm288, %v376, %v375
      %379 = vst.msk [vmem:[#allocation3 + $0x4] sm:$0xf] %vm362, %v377
      %v380 = vld [vmem:[#allocation2 + $0x1] sm:$0x1]
      %v381 = vld [vmem:[#allocation2 + $0x9] sm:$0x1]
      %v382 = vld [vmem:[#allocation2 + $0x11] sm:$0x1]
      %v383 = vld [vmem:[#allocation2 + $0x19] sm:$0x1]
      %v388 = vrot.slane %v381, 7
      %v389 = vsel %vm282, %v388, %v380
      %v390 = vrot.slane %v382, 6
      %v391 = vsel %vm285, %v390, %v389
      %v392 = vrot.slane %v383, 5
      %v393 = vsel %vm288, %v392, %v391
      %394 = vrot.lane.b32.xlu0 %v393, 112
      %v395 = vpop.permute.xlu0 %394
      %397 = vst.msk [vmem:[#allocation3 + $0x8] sm:$0xf] %vm362, %v395
      %v398 = vld [vmem:[%s219 + $0x1] sm:$0x1]
      %v399 = vld [vmem:[%s219 + $0x9] sm:$0x1]
      %v400 = vld [vmem:[%s219 + $0x11] sm:$0x1]
      %v401 = vld [vmem:[%s219 + $0x19] sm:$0x1]
      %v406 = vrot.slane %v399, 7
      %v407 = vsel %vm282, %v406, %v398
      %v408 = vrot.slane %v400, 6
      %v409 = vsel %vm285, %v408, %v407
      %v410 = vrot.slane %v401, 5
      %v411 = vsel %vm288, %v410, %v409
      %412 = vrot.lane.b32.xlu0 %v411, 16
      %v413 = vpop.permute.xlu0 %412
      %415 = vst.msk [vmem:[#allocation3 + $0xc] sm:$0xf] %vm362, %v413
      %v416 = vld [vmem:[#allocation2 + $0x2] sm:$0x1]
      %v417 = vld [vmem:[#allocation2 + $0xa] sm:$0x1]
      %v418 = vld [vmem:[#allocation2 + $0x12] sm:$0x1]
      %v419 = vld [vmem:[#allocation2 + $0x1a] sm:$0x1]
      %v424 = vrot.slane %v417, 7
      %v425 = vsel %vm282, %v424, %v416
      %v426 = vrot.slane %v418, 6
      %v427 = vsel %vm285, %v426, %v425
      %v428 = vrot.slane %v419, 5
      %v429 = vsel %vm288, %v428, %v427
      %430 = vrot.lane.b32.xlu0 %v429, 32
      %v431 = vpop.permute.xlu0 %430
      %vm433 = vcmask 388352
      %434 = vst.msk [vmem:[#allocation3] sm:$0xf] %vm433, %v431
      %v435 = vld [vmem:[#allocation2 + $0x2] sm:$0x1]
      %v436 = vld [vmem:[#allocation2 + $0xa] sm:$0x1]
      %v437 = vld [vmem:[#allocation2 + $0x12] sm:$0x1]
      %v438 = vld [vmem:[#allocation2 + $0x1a] sm:$0x1]
      %v443 = vrot.slane %v436, 7
      %v444 = vsel %vm282, %v443, %v435
      %v445 = vrot.slane %v437, 6
      %v446 = vsel %vm285, %v445, %v444
      %v447 = vrot.slane %v438, 5
      %v448 = vsel %vm288, %v447, %v446
      %449 = vrot.lane.b32.xlu0 %v448, 16
      %v450 = vpop.permute.xlu0 %449
      %452 = vst.msk [vmem:[#allocation3 + $0x4] sm:$0xf] %vm433, %v450
      %v453 = vld [vmem:[#allocation2 + $0x2] sm:$0x1]
      %v454 = vld [vmem:[#allocation2 + $0xa] sm:$0x1]
      %v455 = vld [vmem:[#allocation2 + $0x12] sm:$0x1]
      %v456 = vld [vmem:[#allocation2 + $0x1a] sm:$0x1]
      %v461 = vrot.slane %v454, 7
      %v462 = vsel %vm282, %v461, %v453
      %v463 = vrot.slane %v455, 6
      %v464 = vsel %vm285, %v463, %v462
      %v465 = vrot.slane %v456, 5
      %v466 = vsel %vm288, %v465, %v464
      %468 = vst.msk [vmem:[#allocation3 + $0x8] sm:$0xf] %vm433, %v466
      %v469 = vld [vmem:[%s219 + $0x2] sm:$0x1]
      %v470 = vld [vmem:[%s219 + $0xa] sm:$0x1]
      %v471 = vld [vmem:[%s219 + $0x12] sm:$0x1]
      %v472 = vld [vmem:[%s219 + $0x1a] sm:$0x1]
      %v477 = vrot.slane %v470, 7
      %v478 = vsel %vm282, %v477, %v469
      %v479 = vrot.slane %v471, 6
      %v480 = vsel %vm285, %v479, %v478
      %v481 = vrot.slane %v472, 5
      %v482 = vsel %vm288, %v481, %v480
      %483 = vrot.lane.b32.xlu0 %v482, 32
      %v484 = vpop.permute.xlu0 %483
      %486 = vst.msk [vmem:[#allocation3 + $0xc] sm:$0xf] %vm433, %v484
      %v487 = vld [vmem:[#allocation2 + $0x3] sm:$0x1]
      %v488 = vld [vmem:[#allocation2 + $0xb] sm:$0x1]
      %v489 = vld [vmem:[#allocation2 + $0x13] sm:$0x1]
      %v490 = vld [vmem:[#allocation2 + $0x1b] sm:$0x1]
      %v495 = vrot.slane %v488, 7
      %v496 = vsel %vm282, %v495, %v487
      %v497 = vrot.slane %v489, 6
      %v498 = vsel %vm285, %v497, %v496
      %v499 = vrot.slane %v490, 5
      %v500 = vsel %vm288, %v499, %v498
      %501 = vrot.lane.b32.xlu0 %v500, 48
      %v502 = vpop.permute.xlu0 %501
      %vm504 = vcmask 519552
      %505 = vst.msk [vmem:[#allocation3] sm:$0xf] %vm504, %v502
      %v506 = vld [vmem:[#allocation2 + $0x3] sm:$0x1]
      %v507 = vld [vmem:[#allocation2 + $0xb] sm:$0x1]
      %v508 = vld [vmem:[#allocation2 + $0x13] sm:$0x1]
      %v509 = vld [vmem:[#allocation2 + $0x1b] sm:$0x1]
      %v514 = vrot.slane %v507, 7
      %v515 = vsel %vm282, %v514, %v506
      %v516 = vrot.slane %v508, 6
      %v517 = vsel %vm285, %v516, %v515
      %v518 = vrot.slane %v509, 5
      %v519 = vsel %vm288, %v518, %v517
      %520 = vrot.lane.b32.xlu0 %v519, 32
      %v521 = vpop.permute.xlu0 %520
      %523 = vst.msk [vmem:[#allocation3 + $0x4] sm:$0xf] %vm504, %v521
      %v524 = vld [vmem:[#allocation2 + $0x3] sm:$0x1]
      %v525 = vld [vmem:[#allocation2 + $0xb] sm:$0x1]
      %v526 = vld [vmem:[#allocation2 + $0x13] sm:$0x1]
      %v527 = vld [vmem:[#allocation2 + $0x1b] sm:$0x1]
      %v532 = vrot.slane %v525, 7
      %v533 = vsel %vm282, %v532, %v524
      %v534 = vrot.slane %v526, 6
      %v535 = vsel %vm285, %v534, %v533
      %v536 = vrot.slane %v527, 5
      %v537 = vsel %vm288, %v536, %v535
      %538 = vrot.lane.b32.xlu0 %v537, 16
      %v539 = vpop.permute.xlu0 %538
      %541 = vst.msk [vmem:[#allocation3 + $0x8] sm:$0xf] %vm504, %v539
      %v542 = vld [vmem:[%s219 + $0x3] sm:$0x1]
      %v543 = vld [vmem:[%s219 + $0xb] sm:$0x1]
      %v544 = vld [vmem:[%s219 + $0x13] sm:$0x1]
      %v545 = vld [vmem:[%s219 + $0x1b] sm:$0x1]
      %v550 = vrot.slane %v543, 7
      %v551 = vsel %vm282, %v550, %v542
      %v552 = vrot.slane %v544, 6
      %v553 = vsel %vm285, %v552, %v551
      %v554 = vrot.slane %v545, 5
      %v555 = vsel %vm288, %v554, %v553
      %556 = vrot.lane.b32.xlu0 %v555, 48
      %v557 = vpop.permute.xlu0 %556
      %559 = vst.msk [vmem:[#allocation3 + $0xc] sm:$0xf] %vm504, %v557
      %v560 = vld [vmem:[#allocation2 + $0x4] sm:$0x1]
      %v561 = vld [vmem:[#allocation2 + $0xc] sm:$0x1]
      %v562 = vld [vmem:[#allocation2 + $0x14] sm:$0x1]
      %v563 = vld [vmem:[#allocation2 + $0x1c] sm:$0x1]
      %v568 = vrot.slane %v561, 7
      %v569 = vsel %vm282, %v568, %v560
      %v570 = vrot.slane %v562, 6
      %v571 = vsel %vm285, %v570, %v569
      %v572 = vrot.slane %v563, 5
      %v573 = vsel %vm288, %v572, %v571
      %574 = vrot.lane.b32.xlu0 %v573, 64
      %v575 = vpop.permute.xlu0 %574
      %vm577 = vcmask 650752
      %578 = vst.msk [vmem:[#allocation3] sm:$0xf] %vm577, %v575
      %v579 = vld [vmem:[#allocation2 + $0x4] sm:$0x1]
      %v580 = vld [vmem:[#allocation2 + $0xc] sm:$0x1]
      %v581 = vld [vmem:[#allocation2 + $0x14] sm:$0x1]
      %v582 = vld [vmem:[#allocation2 + $0x1c] sm:$0x1]
      %v587 = vrot.slane %v580, 7
      %v588 = vsel %vm282, %v587, %v579
      %v589 = vrot.slane %v581, 6
      %v590 = vsel %vm285, %v589, %v588
      %v591 = vrot.slane %v582, 5
      %v592 = vsel %vm288, %v591, %v590
      %593 = vrot.lane.b32.xlu0 %v592, 48
      %v594 = vpop.permute.xlu0 %593
      %596 = vst.msk [vmem:[#allocation3 + $0x4] sm:$0xf] %vm577, %v594
      %v597 = vld [vmem:[#allocation2 + $0x4] sm:$0x1]
      %v598 = vld [vmem:[#allocation2 + $0xc] sm:$0x1]
      %v599 = vld [vmem:[#allocation2 + $0x14] sm:$0x1]
      %v600 = vld [vmem:[#allocation2 + $0x1c] sm:$0x1]
      %v605 = vrot.slane %v598, 7
      %v606 = vsel %vm282, %v605, %v597
      %v607 = vrot.slane %v599, 6
      %v608 = vsel %vm285, %v607, %v606
      %v609 = vrot.slane %v600, 5
      %v610 = vsel %vm288, %v609, %v608
      %611 = vrot.lane.b32.xlu0 %v610, 32
      %v612 = vpop.permute.xlu0 %611
      %614 = vst.msk [vmem:[#allocation3 + $0x8] sm:$0xf] %vm577, %v612
      %v615 = vld [vmem:[%s219 + $0x4] sm:$0x1]
      %v616 = vld [vmem:[%s219 + $0xc] sm:$0x1]
      %v617 = vld [vmem:[%s219 + $0x14] sm:$0x1]
      %v618 = vld [vmem:[%s219 + $0x1c] sm:$0x1]
      %v623 = vrot.slane %v616, 7
      %v624 = vsel %vm282, %v623, %v615
      %v625 = vrot.slane %v617, 6
      %v626 = vsel %vm285, %v625, %v624
      %v627 = vrot.slane %v618, 5
      %v628 = vsel %vm288, %v627, %v626
      %629 = vrot.lane.b32.xlu0 %v628, 64
      %v630 = vpop.permute.xlu0 %629
      %632 = vst.msk [vmem:[#allocation3 + $0xc] sm:$0xf] %vm577, %v630
      %v633 = vld [vmem:[#allocation2 + $0x5] sm:$0x1]
      %v634 = vld [vmem:[#allocation2 + $0xd] sm:$0x1]
      %v635 = vld [vmem:[#allocation2 + $0x15] sm:$0x1]
      %v636 = vld [vmem:[#allocation2 + $0x1d] sm:$0x1]
      %v641 = vrot.slane %v634, 7
      %v642 = vsel %vm282, %v641, %v633
      %v643 = vrot.slane %v635, 6
      %v644 = vsel %vm285, %v643, %v642
      %v645 = vrot.slane %v636, 5
      %v646 = vsel %vm288, %v645, %v644
      %647 = vrot.lane.b32.xlu0 %v646, 80
      %v648 = vpop.permute.xlu0 %647
      %vm650 = vcmask 781952
      %651 = vst.msk [vmem:[#allocation3] sm:$0xf] %vm650, %v648
      %v652 = vld [vmem:[#allocation2 + $0x5] sm:$0x1]
      %v653 = vld [vmem:[#allocation2 + $0xd] sm:$0x1]
      %v654 = vld [vmem:[#allocation2 + $0x15] sm:$0x1]
      %v655 = vld [vmem:[#allocation2 + $0x1d] sm:$0x1]
      %v660 = vrot.slane %v653, 7
      %v661 = vsel %vm282, %v660, %v652
      %v662 = vrot.slane %v654, 6
      %v663 = vsel %vm285, %v662, %v661
      %v664 = vrot.slane %v655, 5
      %v665 = vsel %vm288, %v664, %v663
      %666 = vrot.lane.b32.xlu0 %v665, 64
      %v667 = vpop.permute.xlu0 %666
      %669 = vst.msk [vmem:[#allocation3 + $0x4] sm:$0xf] %vm650, %v667
      %v670 = vld [vmem:[#allocation2 + $0x5] sm:$0x1]
      %v671 = vld [vmem:[#allocation2 + $0xd] sm:$0x1]
      %v672 = vld [vmem:[#allocation2 + $0x15] sm:$0x1]
      %v673 = vld [vmem:[#allocation2 + $0x1d] sm:$0x1]
      %v678 = vrot.slane %v671, 7
      %v679 = vsel %vm282, %v678, %v670
      %v680 = vrot.slane %v672, 6
      %v681 = vsel %vm285, %v680, %v679
      %v682 = vrot.slane %v673, 5
      %v683 = vsel %vm288, %v682, %v681
      %684 = vrot.lane.b32.xlu0 %v683, 48
      %v685 = vpop.permute.xlu0 %684
      %687 = vst.msk [vmem:[#allocation3 + $0x8] sm:$0xf] %vm650, %v685
      %v688 = vld [vmem:[%s219 + $0x5] sm:$0x1]
      %v689 = vld [vmem:[%s219 + $0xd] sm:$0x1]
      %v690 = vld [vmem:[%s219 + $0x15] sm:$0x1]
      %v691 = vld [vmem:[%s219 + $0x1d] sm:$0x1]
      %v696 = vrot.slane %v689, 7
      %v697 = vsel %vm282, %v696, %v688
      %v698 = vrot.slane %v690, 6
      %v699 = vsel %vm285, %v698, %v697
      %v700 = vrot.slane %v691, 5
      %v701 = vsel %vm288, %v700, %v699
      %702 = vrot.lane.b32.xlu0 %v701, 80
      %v703 = vpop.permute.xlu0 %702
      %705 = vst.msk [vmem:[#allocation3 + $0xc] sm:$0xf] %vm650, %v703
      %v706 = vld [vmem:[#allocation2 + $0x6] sm:$0x1]
      %v707 = vld [vmem:[#allocation2 + $0xe] sm:$0x1]
      %v708 = vld [vmem:[#allocation2 + $0x16] sm:$0x1]
      %v709 = vld [vmem:[#allocation2 + $0x1e] sm:$0x1]
      %v714 = vrot.slane %v707, 7
      %v715 = vsel %vm282, %v714, %v706
      %v716 = vrot.slane %v708, 6
      %v717 = vsel %vm285, %v716, %v715
      %v718 = vrot.slane %v709, 5
      %v719 = vsel %vm288, %v718, %v717
      %720 = vrot.lane.b32.xlu0 %v719, 96
      %v721 = vpop.permute.xlu0 %720
      %vm723 = vcmask 913152
      %724 = vst.msk [vmem:[#allocation3] sm:$0xf] %vm723, %v721
      %v725 = vld [vmem:[#allocation2 + $0x6] sm:$0x1]
      %v726 = vld [vmem:[#allocation2 + $0xe] sm:$0x1]
      %v727 = vld [vmem:[#allocation2 + $0x16] sm:$0x1]
      %v728 = vld [vmem:[#allocation2 + $0x1e] sm:$0x1]
      %v733 = vrot.slane %v726, 7
      %v734 = vsel %vm282, %v733, %v725
      %v735 = vrot.slane %v727, 6
      %v736 = vsel %vm285, %v735, %v734
      %v737 = vrot.slane %v728, 5
      %v738 = vsel %vm288, %v737, %v736
      %739 = vrot.lane.b32.xlu0 %v738, 80
      %v740 = vpop.permute.xlu0 %739
      %742 = vst.msk [vmem:[#allocation3 + $0x4] sm:$0xf] %vm723, %v740
      %v743 = vld [vmem:[#allocation2 + $0x6] sm:$0x1]
      %v744 = vld [vmem:[#allocation2 + $0xe] sm:$0x1]
      %v745 = vld [vmem:[#allocation2 + $0x16] sm:$0x1]
      %v746 = vld [vmem:[#allocation2 + $0x1e] sm:$0x1]
      %v751 = vrot.slane %v744, 7
      %v752 = vsel %vm282, %v751, %v743
      %v753 = vrot.slane %v745, 6
      %v754 = vsel %vm285, %v753, %v752
      %v755 = vrot.slane %v746, 5
      %v756 = vsel %vm288, %v755, %v754
      %757 = vrot.lane.b32.xlu0 %v756, 64
      %v758 = vpop.permute.xlu0 %757
      %760 = vst.msk [vmem:[#allocation3 + $0x8] sm:$0xf] %vm723, %v758
      %v761 = vld [vmem:[%s219 + $0x6] sm:$0x1]
      %v762 = vld [vmem:[%s219 + $0xe] sm:$0x1]
      %v763 = vld [vmem:[%s219 + $0x16] sm:$0x1]
      %v764 = vld [vmem:[%s219 + $0x1e] sm:$0x1]
      %v769 = vrot.slane %v762, 7
      %v770 = vsel %vm282, %v769, %v761
      %v771 = vrot.slane %v763, 6
      %v772 = vsel %vm285, %v771, %v770
      %v773 = vrot.slane %v764, 5
      %v774 = vsel %vm288, %v773, %v772
      %775 = vrot.lane.b32.xlu0 %v774, 96
      %v776 = vpop.permute.xlu0 %775
      %778 = vst.msk [vmem:[#allocation3 + $0xc] sm:$0xf] %vm723, %v776
      %v779 = vld [vmem:[#allocation2 + $0x7] sm:$0x1]
      %v780 = vld [vmem:[#allocation2 + $0xf] sm:$0x1]
      %v781 = vld [vmem:[#allocation2 + $0x17] sm:$0x1]
      %v782 = vld [vmem:[#allocation2 + $0x1f] sm:$0x1]
      %v787 = vrot.slane %v780, 7
      %v788 = vsel %vm282, %v787, %v779
      %v789 = vrot.slane %v781, 6
      %v790 = vsel %vm285, %v789, %v788
      %v791 = vrot.slane %v782, 5
      %v792 = vsel %vm288, %v791, %v790
      %793 = vrot.lane.b32.xlu0 %v792, 112
      %v794 = vpop.permute.xlu0 %793
      %vm796 = vcmask 1044352
      %797 = vst.msk [vmem:[#allocation3] sm:$0xf] %vm796, %v794
      %v798 = vld [vmem:[#allocation2 + $0x7] sm:$0x1]
      %v799 = vld [vmem:[#allocation2 + $0xf] sm:$0x1]
      %v800 = vld [vmem:[#allocation2 + $0x17] sm:$0x1]
      %v801 = vld [vmem:[#allocation2 + $0x1f] sm:$0x1]
      %v806 = vrot.slane %v799, 7
      %v807 = vsel %vm282, %v806, %v798
      %v808 = vrot.slane %v800, 6
      %v809 = vsel %vm285, %v808, %v807
      %v810 = vrot.slane %v801, 5
      %v811 = vsel %vm288, %v810, %v809
      %812 = vrot.lane.b32.xlu0 %v811, 96
      %v813 = vpop.permute.xlu0 %812
      %815 = vst.msk [vmem:[#allocation3 + $0x4] sm:$0xf] %vm796, %v813
      %v816 = vld [vmem:[#allocation2 + $0x7] sm:$0x1]
      %v817 = vld [vmem:[#allocation2 + $0xf] sm:$0x1]
      %v818 = vld [vmem:[#allocation2 + $0x17] sm:$0x1]
      %v819 = vld [vmem:[#allocation2 + $0x1f] sm:$0x1]
      %v824 = vrot.slane %v817, 7
      %v825 = vsel %vm282, %v824, %v816
      %v826 = vrot.slane %v818, 6
      %v827 = vsel %vm285, %v826, %v825
      %v828 = vrot.slane %v819, 5
      %v829 = vsel %vm288, %v828, %v827
      %830 = vrot.lane.b32.xlu0 %v829, 80
      %v831 = vpop.permute.xlu0 %830
      %833 = vst.msk [vmem:[#allocation3 + $0x8] sm:$0xf] %vm796, %v831
      %v834 = vld [vmem:[%s219 + $0x7] sm:$0x1]
      %v835 = vld [vmem:[%s219 + $0xf] sm:$0x1]
      %v836 = vld [vmem:[%s219 + $0x17] sm:$0x1]
      %v837 = vld [vmem:[%s219 + $0x1f] sm:$0x1]
      %v842 = vrot.slane %v835, 7
      %v843 = vsel %vm282, %v842, %v834
      %v844 = vrot.slane %v836, 6
      %v845 = vsel %vm285, %v844, %v843
      %v846 = vrot.slane %v837, 5
      %v847 = vsel %vm288, %v846, %v845
      %848 = vrot.lane.b32.xlu0 %v847, 112
      %v849 = vpop.permute.xlu0 %848
      %851 = vst.msk [vmem:[#allocation3 + $0xc] sm:$0xf] %vm796, %v849
      %v852 = vld [vmem:[%s2] sm:$0x3]
      %v853 = vld [vmem:[#allocation3] sm:$0xff]
      %v854 = vld [vmem:[#allocation3 + $0x8] sm:$0xf]
      %v855 = vpack.c.bf16 %v854, %v853
      %v856 = vld [vmem:[%s3] sm:$0xf]
      %858 = vset.pattern.permute.xlu0 0
      %859 = vperm.xlu0 %858, %v856
      %v860 = vpop.permute.xlu0 %859
      %vm862 = vcmask 97280
      %v864 = vsel %vm862, %v852, 0
      %vm866 = vcmask 1045504
      %v868 = vsel %vm866, %v855, 0
      %870 = vmatpush.bf16.msra.mxu0 0
      %871 = vmatpush.bf16.msra.mxu0 0
      %872 = vmatpush.bf16.msra.mxu0 0
      %873 = vmatpush.bf16.msra.mxu0 0
      %874 = vmatpush.bf16.msra.mxu0 0
      %875 = vmatpush.bf16.msra.mxu0 0
      %876 = vmatpush.bf16.msra.mxu0 0
      %877 = vmatpush.bf16.msra.mxu0 %v868
      %878 = vmatmul.bf16.gmra.mxu0 %v864
      %v879 = vpop.f32.mrf.mxu0
      %v880 = vadd.f32 %v860, %v879
      %v881 = vpop.f32.mrf.mxu0
      %882 = vdwg.mxu0
      %v883 = vld [vmem:[#allocation3 + $0xc] sm:$0xf]
      %v884 = vadd.f32 %v880, %v883
      %v885 = vmax.f32 %v884, 0.0
      %886 = vst [vmem:[%s226] sm:$0xf] %v885
      %p887 = scmp.lt.s32.totalorder %s19, 1
      %s888 = scalar_select %p887, %s19, 1
      %p889 = scmp.lt.s32.totalorder %s20, 0
      %s890 = scalar_select %p889, %s20, 0
      %s891 = sadd.s32 %s890, %s888
      %s892 = smul.addr %s891, 4
      %s893 = scalar_lea.vmem %s4, %s892
      // Predicated region
      $region37: #{slayer_forward.1} parent=35 // pred_check
        %p894 = pneg %p138
      $region38: #{slayer_forward.1} parent=35 // pred_check_branch
        %896 = sbr.rel (%p894) target = $region40
      $region39: #{slayer_forward.1} parent=35 // pred_region
        _
      $region40: #{slayer_forward.1} parent=35 // pred_fallthru
        _
    $region36: #{slayer_forward.1} parent=5 // pred_fallthru
      _
    %p897 = scmp.le.s32.totalorder 2, %s10
    // Predicated region
    $region41: #{slayer_forward.1} parent=5 // pred_check
      %p898 = pneg %p897
    $region42: #{slayer_forward.1} parent=5 // pred_check_branch
      %900 = sbr.rel (%p898) target = $region44
    $region43: #{slayer_forward.1} parent=5 // pred_region
      %s901 = ssub.s32 %s10, 2
      // Predicated region
      $region45: #{slayer_forward.1} parent=43 // pred_check
        %p902 = pneg %p144
      $region46: #{slayer_forward.1} parent=43 // pred_check_branch
        %904 = sbr.rel (%p902) target = $region48
      $region47: #{slayer_forward.1} parent=43 // pred_region
        %p905 = scmp.lt.s32.totalorder %s21, 1
        %s906 = scalar_select %p905, %s21, 1
        %p907 = scmp.lt.s32.totalorder %s22, 0
        %s908 = scalar_select %p907, %s22, 0
        %s909 = sadd.s32 %s908, %s906
        %s910 = smul.addr %s909, 4
        %s911 = scalar_lea.vmem %s4, %s910
      $region48: #{slayer_forward.1} parent=43 // pred_fallthru
        _
    $region44: #{slayer_forward.1} parent=5 // pred_fallthru
      _
  $region6: #{slayer_forward.1} parent=0 // loop_footer
    %s14 = sadd.s32 1, %s10
  $region7: #{slayer_forward.1} parent=0 // loop_footer_branch
    %9 = sbr.rel target = $region3
  $region8: #{slayer_forward.1} parent=0 // loop_exit
    _

</llo_original>
